<compile_context>
chip_gen: v7x
topology: tpu7x:2x2x1
jax: 0.10.0
libtpu: 0.0.40
codegen_flags: <defaults>
</compile_context>

<pallas_src>
import jax
import jax.numpy as jnp
from jax.experimental import pallas as pl
from jax.experimental.pallas import tpu as pltpu


def predictor_kernel(x_ref, w1_ref, b1_ref, w2_ref, b2_ref, o_ref):
    """One batch tile.

    x_ref  : [TILE_B, input_dim]  (batch tile, pipelined)
    w1_ref : [input_dim, hidden]  (VMEM resident across the grid)
    b1_ref : [1, hidden]          (VMEM resident)
    w2_ref : [1, hidden]          (VMEM resident, row layout of w2)
    b2_ref : [1, 1] in SMEM       (scalar)
    o_ref  : [TILE_B, 1]
    """
    # Layer 1 on the MXU: [TILE_B, input_dim] @ [input_dim, hidden] -> [TILE_B, hidden]
    h = jnp.dot(x_ref[...], w1_ref[...], preferred_element_type=jnp.float32)
    h = jnp.sin(h + b1_ref[...])                         # bias broadcast over rows, then Sin()
    # Layer 2 (32 -> 1): VPU multiply + lane reduce instead of an N=1 MXU matmul.
    out = jnp.sum(h * w2_ref[...], axis=1, keepdims=True)          # [TILE_B, 1]
    o_ref[...] = (out + b2_ref[0, 0]).astype(o_ref.dtype)


def _round_up(x, m):
    return ((x + m - 1) // m) * m


def predictor_forward(x, w1, b1, w2, b2, *, max_tile_b=8192):
    """x: [B, input_dim] f32 -> [B, 1] f32 (eval-mode dropout = identity).

    Params follow the math layout of the original module:
      w1: [input_dim, hidden], b1: [1, hidden], w2: [hidden, 1], b2: [1, 1].
    """
    B, input_dim = x.shape
    hidden = w1.shape[1]

    # Tile selection: big tiles to amortize per-grid-step overhead; keep the
    # sublane axis a multiple of 8.  No padding of x — Pallas handles the
    # ragged last block and the output stays exactly (B, 1).
    b_r = _round_up(B, 8)
    tile_b = min(max_tile_b, b_r)
    # v7x megacore: if the whole batch fits in one tile but is big enough,
    # split into two parallel grid steps so both TensorCores get work.
    if tile_b == b_r and b_r >= 2048:
        tile_b = _round_up(pl.cdiv(b_r, 2), 8)
    grid = (pl.cdiv(B, tile_b),)

    w2_row = w2.reshape(1, hidden)                       # [1, hidden] for lane-wise multiply

    itemsize = jnp.dtype(x.dtype).itemsize
    cost = pl.CostEstimate(
        flops=2 * B * input_dim * hidden + 2 * B * hidden,
        transcendentals=B * hidden,
        bytes_accessed=int((B * input_dim + B) * itemsize
                           + (input_dim * hidden + 2 * hidden + 1) * 4),
    )

    out = pl.pallas_call(
        predictor_kernel,
        out_shape=jax.ShapeDtypeStruct((B, 1), x.dtype),
        grid=grid,
        in_specs=[
            pl.BlockSpec((tile_b, input_dim), lambda i: (i, 0)),     # x tile, pipelined
            pl.BlockSpec((input_dim, hidden), lambda i: (0, 0)),     # w1 resident
            pl.BlockSpec((1, hidden), lambda i: (0, 0)),             # b1 resident
            pl.BlockSpec((1, hidden), lambda i: (0, 0)),             # w2 (row) resident
            pl.BlockSpec(memory_space=pltpu.MemorySpace.SMEM),       # b2 scalar
        ],
        out_specs=pl.BlockSpec((tile_b, 1), lambda i: (i, 0)),
        compiler_params=pltpu.CompilerParams(
            dimension_semantics=("parallel",),
        ),
        cost_estimate=cost,
    )(x, w1, b1, w2_row, b2)

    return out                                           # already [B, 1]


def init_params(key, input_dim=40, hidden=32):
    """Deterministic init mimicking PyTorch nn.Linear default (U[-1/sqrt(fan_in), 1/sqrt(fan_in)])."""
    k1, k2, k3, k4 = jax.random.split(key, 4)
    bound1 = 1.0 / jnp.sqrt(jnp.float32(input_dim))
    bound2 = 1.0 / jnp.sqrt(jnp.float32(hidden))
    w1 = jax.random.uniform(k1, (input_dim, hidden), jnp.float32, -bound1, bound1)
    b1 = jax.random.uniform(k2, (1, hidden), jnp.float32, -bound1, bound1)
    w2 = jax.random.uniform(k3, (hidden, 1), jnp.float32, -bound2, bound2)
    b2 = jax.random.uniform(k4, (1, 1), jnp.float32, -bound2, bound2)
    return w1, b1, w2, b2


if __name__ == "__main__":
    input_dim = 40
    hidden = 32

    key = jax.random.PRNGKey(0)
    kx, kp, kx2 = jax.random.split(key, 3)
    w1, b1, w2, b2 = init_params(kp, input_dim=input_dim, hidden=hidden)

    fwd = jax.jit(predictor_forward, static_argnames=("max_tile_b",))

    def ref_fn(x):
        # Plain-JAX reference (dropout = identity in eval mode).
        return jnp.dot(jnp.sin(jnp.dot(x, w1) + b1), w2) + b2

    # Small toy case (B=8): single tile.
    x_small = jax.random.normal(kx, (8, input_dim), dtype=jnp.float32)
    out_small = jax.block_until_ready(fwd(x_small, w1, b1, w2, b2))
    assert out_small.shape == (8, 1)
    assert jnp.allclose(out_small, ref_fn(x_small), atol=1e-5, rtol=1e-5)

    # Multi-tile + ragged last block (B=300 with tile_b capped at 128).
    x_med = jax.random.normal(kx2, (300, input_dim), dtype=jnp.float32)
    out_med = jax.block_until_ready(fwd(x_med, w1, b1, w2, b2, max_tile_b=128))
    assert out_med.shape == (300, 1)
    assert jnp.allclose(out_med, ref_fn(x_med), atol=1e-5, rtol=1e-5)

    print("KERNEL_OK")
</pallas_src>

<mosaic_0001>
module attributes {stable_mosaic.version = 11 : i64} {
  func.func @predictor_kernel(%arg0: i32, %arg1: memref<8x40xf32, #tpu.memory_space<vmem>>, %arg2: memref<40x32xf32, #tpu.memory_space<vmem>>, %arg3: memref<1x32xf32, #tpu.memory_space<vmem>>, %arg4: memref<1x32xf32, #tpu.memory_space<vmem>>, %arg5: memref<1x1xf32, #tpu.memory_space<smem>>, %arg6: memref<8x1xf32, #tpu.memory_space<vmem>>) attributes {dimension_semantics = [#tpu.dimension_semantics<parallel>], iteration_bounds = array<i64: 1>, scalar_prefetch = 0 : i64, scratch_operands = 0 : i64, tpu.core_type = #tpu.core_type<tc>, window_params = [{transform_indices = @transform_0, window_bounds = array<i64: 8, 40>}, {pipeline_mode = #tpu.pipeline_mode<synchronous>, transform_indices = @transform_1, window_bounds = array<i64: 40, 32>}, {pipeline_mode = #tpu.pipeline_mode<synchronous>, transform_indices = @transform_2, window_bounds = array<i64: 1, 32>}, {pipeline_mode = #tpu.pipeline_mode<synchronous>, transform_indices = @transform_3, window_bounds = array<i64: 1, 32>}, {transform_indices = @transform_4, window_bounds = array<i64: 1, 1>}, {transform_indices = @transform_5, window_bounds = array<i64: 8, 1>}]} {
    %c0 = arith.constant 0 : index
    %c0_0 = arith.constant 0 : index
    %0 = vector.load %arg1[%c0, %c0_0] : memref<8x40xf32, #tpu.memory_space<vmem>>, vector<8x40xf32>
    %c0_1 = arith.constant 0 : index
    %c0_2 = arith.constant 0 : index
    %1 = vector.load %arg2[%c0_1, %c0_2] : memref<40x32xf32, #tpu.memory_space<vmem>>, vector<40x32xf32>
    %cst = arith.constant dense<0.000000e+00> : vector<8x32xf32>
    %2 = tpu.matmul %0, %1, %cst {dimension_numbers = #tpu.dot_dimension_numbers<[1], [0], [0], [1], [0, 0, 1, 1], [], []>} : vector<8x40xf32>, vector<40x32xf32>, vector<8x32xf32> -> vector<8x32xf32>
    %c0_3 = arith.constant 0 : index
    %c0_4 = arith.constant 0 : index
    %3 = vector.load %arg3[%c0_3, %c0_4] : memref<1x32xf32, #tpu.memory_space<vmem>>, vector<1x32xf32>
    %4 = vector.broadcast %3 : vector<1x32xf32> to vector<8x32xf32>
    %5 = arith.addf %2, %4 : vector<8x32xf32>
    %6 = math.sin %5 : vector<8x32xf32>
    %c0_5 = arith.constant 0 : index
    %c0_6 = arith.constant 0 : index
    %7 = vector.load %arg4[%c0_5, %c0_6] : memref<1x32xf32, #tpu.memory_space<vmem>>, vector<1x32xf32>
    %8 = vector.broadcast %7 : vector<1x32xf32> to vector<8x32xf32>
    %9 = arith.mulf %6, %8 : vector<8x32xf32>
    %cst_7 = arith.constant dense<0.000000e+00> : vector<8xf32>
    %10 = vector.multi_reduction <add>, %9, %cst_7 [1] : vector<8x32xf32> to vector<8xf32>
    %11 = vector.shape_cast %10 : vector<8xf32> to vector<8x1xf32>
    %c0_8 = arith.constant 0 : index
    %c0_9 = arith.constant 0 : index
    %12 = memref.load %arg5[%c0_8, %c0_9] : memref<1x1xf32, #tpu.memory_space<smem>>
    %13 = vector.broadcast %12 : f32 to vector<8x1xf32>
    %14 = arith.addf %11, %13 : vector<8x1xf32>
    %c0_10 = arith.constant 0 : index
    %c0_11 = arith.constant 0 : index
    %15 = vector.load %arg6[%c0_10, %c0_11] : memref<8x1xf32, #tpu.memory_space<vmem>>, vector<8x1xf32>
    tpu.vector_store %arg6[%c0_10, %c0_11], %14 {strides = array<i32>} : memref<8x1xf32, #tpu.memory_space<vmem>>, vector<8x1xf32>,
    return
  }
  func.func @transform_0(%arg0: i32) -> (i32, i32) {
    %c0_i32 = arith.constant 0 : i32
    %c0_i32_0 = arith.constant 0 : i32
    return %arg0, %c0_i32 : i32, i32
  }
  func.func @transform_1(%arg0: i32) -> (i32, i32) {
    %c0_i32 = arith.constant 0 : i32
    %c0_i32_0 = arith.constant 0 : i32
    %c0_i32_1 = arith.constant 0 : i32
    return %c0_i32, %c0_i32_0 : i32, i32
  }
  func.func @transform_2(%arg0: i32) -> (i32, i32) {
    %c0_i32 = arith.constant 0 : i32
    %c0_i32_0 = arith.constant 0 : i32
    %c0_i32_1 = arith.constant 0 : i32
    return %c0_i32, %c0_i32_0 : i32, i32
  }
  func.func @transform_3(%arg0: i32) -> (i32, i32) {
    %c0_i32 = arith.constant 0 : i32
    %c0_i32_0 = arith.constant 0 : i32
    %c0_i32_1 = arith.constant 0 : i32
    return %c0_i32, %c0_i32_0 : i32, i32
  }
  func.func @transform_4(%arg0: i32) -> (i32, i32) {
    %c0_i32 = arith.constant 0 : i32
    %c0_i32_0 = arith.constant 0 : i32
    %c0_i32_1 = arith.constant 0 : i32
    return %c0_i32, %c0_i32_0 : i32, i32
  }
  func.func @transform_5(%arg0: i32) -> (i32, i32) {
    %c0_i32 = arith.constant 0 : i32
    %c0_i32_0 = arith.constant 0 : i32
    return %arg0, %c0_i32 : i32, i32
  }
}

</mosaic_0001>

<llo_original>
// kernel: predictor_forward.1
$region0: #{predictor_forward.1}
  #allocation0 [shape = 'u32[]', space=smem, size = 0x4, offset = 0x4, fixed_abs, tag = 'smem constant byte address 0x4 - core index']
  #allocation1 [shape = 'u32[144,128]{1,0:T(1,128)}', space=vmem, size = 0x12000, scoped, tag = 'internal scratch']
  #allocation2 [shape = 'f32[1,1]{1,0:T(1,128)S(6)}', space=smem, size = 0x200, scoped, tag = 'scoped memory for predictor_forward.1']
  %s0 = inlined_call_operand.vmem [shape: f32[8,40], index: 0, kind: input, shape index: {}]
  %s1 = inlined_call_operand.vmem [shape: f32[40,32], index: 1, kind: input, shape index: {}]
  %s2 = inlined_call_operand.vmem [shape: f32[1,32], index: 2, kind: input, shape index: {}]
  %s3 = inlined_call_operand.vmem [shape: f32[1,32], index: 3, kind: input, shape index: {}]
  %s4 = inlined_call_operand.<no memory space> [shape: f32[1,1], index: 4, kind: input, shape index: {}]
  %s5 = inlined_call_operand.vmem [shape: f32[8,1], index: 5, kind: output, shape index: {}]
  %s6 = sld [smem:[#allocation0]]
  $region30: #{predictor_forward.1} parent=0
    _
  %s8 = ssub.s32 1, %s6
  %s9 = scalar_select 0, %s8, %s6
  %10 = sst [smem:[#allocation2]] %s4
  // Predicated region
  $region2: #{predictor_forward.1} parent=0 // pred_check
    _
  $region3: #{predictor_forward.1} parent=0 // pred_check_branch
    %12 = sbr.rel (0) target = $region5
  $region4: #{predictor_forward.1} parent=0 // pred_region
    _
  $region5: #{predictor_forward.1} parent=0 // pred_fallthru
    _
  // Predicated region
  $region6: #{predictor_forward.1} parent=0 // pred_check
    _
  $region7: #{predictor_forward.1} parent=0 // pred_check_branch
    %14 = sbr.rel (0) target = $region9
  $region8: #{predictor_forward.1} parent=0 // pred_region
    _
  $region9: #{predictor_forward.1} parent=0 // pred_fallthru
    _
  // Predicated region
  $region10: #{predictor_forward.1} parent=0 // pred_check
    _
  $region11: #{predictor_forward.1} parent=0 // pred_check_branch
    %16 = sbr.rel (0) target = $region13
  $region12: #{predictor_forward.1} parent=0 // pred_region
    _
  $region13: #{predictor_forward.1} parent=0 // pred_fallthru
    _
  // Predicated region
  $region14: #{predictor_forward.1} parent=0 // pred_check
    _
  $region15: #{predictor_forward.1} parent=0 // pred_check_branch
    %18 = sbr.rel (0) target = $region17
  $region16: #{predictor_forward.1} parent=0 // pred_region
    _
  $region17: #{predictor_forward.1} parent=0 // pred_fallthru
    _
  // Predicated region
  $region18: #{predictor_forward.1} parent=0 // pred_check
    _
  $region19: #{predictor_forward.1} parent=0 // pred_check_branch
    %20 = sbr.rel (0) target = $region21
  $region20: #{predictor_forward.1} parent=0 // pred_region
    _
  $region21: #{predictor_forward.1} parent=0 // pred_fallthru
    _
  %v21 = vld [vmem:[%s0] sm:$0xff]
  %v22 = vld [vmem:[%s1] sm:$0xff]
  %v23 = vld [vmem:[%s1 + $0x8] sm:$0xff]
  %v24 = vld [vmem:[%s1 + $0x10] sm:$0xff]
  %v25 = vld [vmem:[%s1 + $0x18] sm:$0xff]
  %v26 = vld [vmem:[%s1 + $0x20] sm:$0xff]
  %v27 = vld [vmem:[%s2] sm:$0x1]
  %v29 = vlaneseq
  %v30 = vshrl.u32 %v29, 7
  %v31 = vsub.s32 0, %v30
  %v32 = vrot.slane %v27, %v31
  %vm34 = vcmask 326656
  %v36 = vsel %vm34, %v21, 0
  %38 = vmatprep.subr.mxu0 0.0
  %39 = vmatpush1.msra.mxu0 %v22
  %40 = vmatprep.subr.mxu0 0.0
  %41 = vmatpush1.msra.mxu0 %v23
  %42 = vmatprep.subr.mxu0 0.0
  %43 = vmatpush1.msra.mxu0 %v24
  %44 = vmatprep.subr.mxu0 0.0
  %45 = vmatpush1.msra.mxu0 %v25
  %46 = vmatprep.subr.mxu0 0.0
  %47 = vmatpush1.msra.mxu0 %v26
  %48 = vmatprep.subr.mxu0 0.0
  %49 = vmatpush1.msra.mxu0 0.0
  %50 = vmatprep.subr.mxu0 0.0
  %51 = vmatpush1.msra.mxu0 0.0
  %52 = vmatprep.subr.mxu0 0.0
  %53 = vmatpush1.msra.mxu0 0.0
  %54 = vmatprep.subr.mxu0 0.0
  %55 = vmatpush1.msra.mxu0 0.0
  %56 = vmatprep.subr.mxu0 0.0
  %57 = vmatpush1.msra.mxu0 0.0
  %58 = vmatprep.subr.mxu0 0.0
  %59 = vmatpush1.msra.mxu0 0.0
  %60 = vmatprep.subr.mxu0 0.0
  %61 = vmatpush1.msra.mxu0 0.0
  %62 = vmatprep.subr.mxu0 0.0
  %63 = vmatpush1.msra.mxu0 0.0
  %64 = vmatprep.subr.mxu0 0.0
  %65 = vmatpush1.msra.mxu0 0.0
  %66 = vmatprep.subr.mxu0 0.0
  %67 = vmatpush1.msra.mxu0 0.0
  %68 = vmatprep.subr.mxu0 0.0
  %69 = vmatpush1.msra.mxu0 0.0
  %70 = vmatprep.subr.mxu0 0.0
  %71 = vmatpush1.msra.mxu0 0.0
  %72 = vmatprep.subr.mxu0 0.0
  %73 = vmatpush1.msra.mxu0 0.0
  %74 = vmatprep.subr.mxu0 0.0
  %75 = vmatpush1.msra.mxu0 0.0
  %76 = vmatprep.subr.mxu0 0.0
  %77 = vmatpush1.msra.mxu0 0.0
  %78 = vmatprep.subr.mxu0 0.0
  %79 = vmatpush1.msra.mxu0 0.0
  %80 = vmatprep.subr.mxu0 0.0
  %81 = vmatpush1.msra.mxu0 0.0
  %82 = vmatprep.subr.mxu0 0.0
  %83 = vmatpush1.msra.mxu0 0.0
  %84 = vmatprep.subr.mxu0 0.0
  %85 = vmatpush1.msra.mxu0 0.0
  %86 = vmatprep.subr.mxu0 0.0
  %87 = vmatpush1.msra.mxu0 0.0
  %88 = vmatprep.subr.mxu0 0.0
  %89 = vmatpush1.msra.mxu0 0.0
  %90 = vmatprep.subr.mxu0 0.0
  %91 = vmatpush1.msra.mxu0 0.0
  %92 = vmatprep.subr.mxu0 0.0
  %93 = vmatpush1.msra.mxu0 0.0
  %94 = vmatprep.subr.mxu0 0.0
  %95 = vmatpush1.msra.mxu0 0.0
  %96 = vmatprep.subr.mxu0 0.0
  %97 = vmatpush1.msra.mxu0 0.0
  %98 = vmatprep.subr.mxu0 0.0
  %99 = vmatpush1.msra.mxu0 0.0
  %100 = vmatprep.subr.mxu0 0.0
  %101 = vmatpush1.msra.mxu0 0.0
  %102 = vmatprep.mubr.f32.mxu0 0.0
  %103 = vmatmul.mubr.f32.gmra.mrb[0].mxu0 %v36
  %v104 = vpop.f32.mrb[0].mxu0
  %v105 = vadd.f32 %v32, %v104
  %v106 = vpop.f32.mrb[0].mxu0
  %107 = vdwg.mxu0
  %v108 = vand.u32 2147483647, %v105
  %vm109 = vcmp.le.f32.partialorder %v108, 0.7853982
  %vm110 = vcmp.lt.s32.totalorder %v105, 0
  %v111 = vand.u32 %v105, 2139095040
  %v112 = vshrl.u32 %v111, 23
  %v113 = vsub.s32 %v112, 127
  %v114 = vand.u32 2147483647, %v105
  %v115 = vand.u32 %v114, 8388607
  %v116 = vor.u32 %v115, 8388608
  %v117 = vsub.s32 0, %v116
  %v118 = vadd.s32 %v113, 1
  %vm119 = vcmp.gt.s32.totalorder %v118, 0
  %v120 = vsel %vm119, %v118, 0
  %v121 = vshrl.u32 %v120, 5
  %v122 = vand.u32 %v120, 31
  %v123 = vsub.s32 32, %v122
  %v124 = vshrl.u32 683565275, %v123
  %v125 = vshll.u32 683565275, %v122
  %v126 = vshrl.u32 2475754826, %v123
  %v127 = vor.u32 %v125, %v126
  %v128 = vshll.u32 2475754826, %v122
  %v129 = vshrl.u32 2131351028, %v123
  %v130 = vor.u32 %v128, %v129
  %v131 = vshll.u32 2131351028, %v122
  %v132 = vshrl.u32 2102212464, %v123
  %v133 = vor.u32 %v131, %v132
  %v134 = vshll.u32 2102212464, %v122
  %v135 = vshrl.u32 920167782, %v123
  %v136 = vor.u32 %v134, %v135
  %v137 = vshll.u32 920167782, %v122
  %v138 = vshrl.u32 1326507024, %v123
  %v139 = vor.u32 %v137, %v138
  %vm140 = vcmp.lt.s32.totalorder %v121, 1
  %vm141 = vcmp.lt.s32.totalorder %v121, 2
  %vm142 = vcmp.lt.s32.totalorder %v121, 3
  %vm143 = vcmp.lt.s32.totalorder %v121, 4
  %v144 = vsel %vm140, %v124, %v127
  %v145 = vsel %vm143, %v133, 2102212464
  %v146 = vsel %vm142, %v130, %v145
  %v147 = vsel %vm141, %v144, %v146
  %v148 = vsel %vm140, %v127, %v130
  %v149 = vsel %vm143, %v136, 920167782
  %v150 = vsel %vm142, %v133, %v149
  %v151 = vsel %vm141, %v148, %v150
  %v152 = vsel %vm140, %v130, %v133
  %v153 = vsel %vm143, %v139, 1326507024
  %v154 = vsel %vm142, %v136, %v153
  %v155 = vsel %vm141, %v152, %v154
  %v156 = vshll.u32 %v116, 8
  %v157 = vmul.u32.u64.compose %v156, %v155
  %v158 = vextract.low.u32 %v157
  %v159 = vextract.high.u32 %v157
  %v160 = vmul.u32.u64.compose %v156, %v151
  %v161 = vextract.low.u32 %v160
  %v162 = vextract.high.u32 %v160
  %v163 = vmul.u32 %v156, %v147
  %v164 = vadd.s32 %v159, %v161
  %vm165 = vc.u32 %v159, %v161
  %v166 = vadd.s32 %v162, 1
  %v167 = vsel %vm165, %v166, %v162
  %v168 = vadd.s32 %v163, %v167
  %v169 = vadd.s32 %v168, 536870912
  %v170 = vshrl.u32 %v169, 30
  %v171 = vshll.u32 %v170, 30
  %v172 = vsub.s32 %v168, %v171
  %vm173 = vcmp.lt.s32.totalorder %v172, 0
  %v174 = vsub.s32 0, %v172
  %v175 = vsel %vm173, %v174, %v172
  %v176 = vclz %v175
  %v177 = vsub.s32 %v176, 2
  %vm178 = vcmp.gt.s32.totalorder 0, %v177
  %v179 = vsel %vm178, 0, %v177
  %v180 = vsub.s32 32, %v179
  %v181 = vshll.u32 %v172, %v179
  %v182 = vshrl.u32 %v164, %v180
  %v183 = vor.u32 %v181, %v182
  %v184 = vsub.s32 4294967266, %v179
  %v185 = vadd.s32 %v184, 127
  %v186 = vshll.u32 %v185, 23
  %v187 = vor.u32 4788187, %v186
  %v188 = vand.u32 2147483647, %v187
  %v190 = vcvt.s32.f32 %v183
  %v191 = vmul.f32 %v190, %v188
  %v192 = vxor.u32 %v191, 2147483648
  %v193 = vsel %vm110, %v192, %v191
  %v194 = vsub.s32 4, %v170
  %v195 = vsel %vm110, %v194, %v170
  %v196 = vsel %vm109, %v105, %v193
  %v197 = vsel %vm109, 0, %v195
  %v198 = vcosq.f32.pop %v196
  %v199 = vsinq.f32.pop %v196
  %vm200 = vweird.f32 %v105
  %v201 = vadd.s32 %v197, 3
  %v202 = vand.u32 %v201, 3
  %vm203 = vcmp.lt.s32.totalorder %v202, 2
  %vm204 = vcmp.eq.s32.totalorder %v202, 0
  %v205 = vxor.u32 %v199, 2147483648
  %v206 = vsel %vm204, %v198, %v205
  %vm207 = vcmp.eq.s32.totalorder %v202, 2
  %v208 = vxor.u32 %v198, 2147483648
  %v209 = vsel %vm207, %v208, %v199
  %v210 = vsel %vm203, %v206, %v209
  %v211 = vsel %vm200, nan, %v210
  %v212 = vld [vmem:[%s3] sm:$0x1]
  %v214 = vlaneseq
  %v215 = vshrl.u32 %v214, 7
  %v216 = vsub.s32 0, %v215
  %v217 = vrot.slane %v212, %v216
  %v219 = vmul.f32 %v211, %v217
  %vm220 = vcmask 261120
  %v221 = vsel %vm220, %v219, 0.0
  %222 = vadd.xlane.f32.xlu0 %v221
  %v223 = vpop.xlane.xlu0 %222
  %s224 = sld [smem:[#allocation2]]
  %v225 = vstv %s224
  %v226 = vadd.f32 %v223, %v225
  %vm227 = vcmask 7168
  %228 = vst.msk [vmem:[%s5] sm:$0xff] %vm227, %v226
  // Predicated region
  $region22: #{predictor_forward.1} parent=0 // pred_check
    _
  $region23: #{predictor_forward.1} parent=0 // pred_check_branch
    %230 = sbr.rel (0) target = $region25
  $region24: #{predictor_forward.1} parent=0 // pred_region
    _
  $region25: #{predictor_forward.1} parent=0 // pred_fallthru
    _
  // Predicated region
  $region26: #{predictor_forward.1} parent=0 // pred_check
    _
  $region27: #{predictor_forward.1} parent=0 // pred_check_branch
    %232 = sbr.rel (0) target = $region29
  $region28: #{predictor_forward.1} parent=0 // pred_region
    _
  $region29: #{predictor_forward.1} parent=0 // pred_fallthru
    _

</llo_original>
